<compile_context>
chip_gen: v7x
topology: tpu7x:2x2x1
jax: 0.10.0
libtpu: 0.0.40
codegen_flags: <defaults>
</compile_context>

<pallas_src>
import functools
import math

import jax
import jax.numpy as jnp
from jax import lax
from jax.experimental import pallas as pl
from jax.experimental.pallas import tpu as pltpu

_LN_EPS = 1e-5
_NEG_BIG = -1e30  # "running max" init (finite, avoids inf-inf edge cases)


def _layernorm(x, gamma, beta):
    mu = jnp.mean(x, axis=-1, keepdims=True)
    var = jnp.mean((x - mu) ** 2, axis=-1, keepdims=True)
    return (x - mu) * lax.rsqrt(var + _LN_EPS) * gamma + beta


# ----------------------------------------------------------------------------
# Pass 1: LN1 + fused QKV projection (Conv1D: y = x @ W + b), q pre-scaled.
# ----------------------------------------------------------------------------
def _ln_qkv_kernel(x_ref, ln1g_ref, ln1b_ref, wqkv_ref, bqkv_ref,
                   q_ref, k_ref, v_ref, *, head_dim: int):
    x = x_ref[0].astype(jnp.float32)                       # (tq, C)
    C = x.shape[-1]
    ln1 = _layernorm(x, ln1g_ref[...], ln1b_ref[...])
    qkv = jnp.dot(ln1.astype(wqkv_ref.dtype), wqkv_ref[...],
                  preferred_element_type=jnp.float32) + bqkv_ref[...]
    scale = 1.0 / math.sqrt(float(head_dim))               # fold scale into q
    q_ref[0] = (qkv[:, 0 * C:1 * C] * scale).astype(q_ref.dtype)
    k_ref[0] = qkv[:, 1 * C:2 * C].astype(k_ref.dtype)
    v_ref[0] = qkv[:, 2 * C:3 * C].astype(v_ref.dtype)


# ----------------------------------------------------------------------------
# Pass 2: flash-style causal attention + residual + LN2 + MLP, fused per q-tile.
# ----------------------------------------------------------------------------
def _attn_mlp_kernel(x_ref, q_ref, k_ref, v_ref,
                     ln2g_ref, ln2b_ref, w1_ref, b1_ref, w2_ref, b2_ref,
                     out_ref,
                     m_sc, l_sc, acc_sc, *, num_heads: int):
    qi = pl.program_id(1)
    ki = pl.program_id(2)
    n_kv = pl.num_programs(2)

    tq = q_ref.shape[1]
    tkv = k_ref.shape[1]
    C = q_ref.shape[2]
    H = num_heads
    D = C // H

    @pl.when(ki == 0)
    def _init():
        m_sc[...] = jnp.full_like(m_sc, jnp.float32(_NEG_BIG))
        l_sc[...] = jnp.zeros_like(l_sc)
        acc_sc[...] = jnp.zeros_like(acc_sc)

    # Skip KV tiles that lie entirely in the causally-masked (future) region.
    @pl.when(ki * tkv <= (qi + 1) * tq - 1)
    def _update():
        q = q_ref[0].reshape(tq, H, D)                     # bf16, pre-scaled
        k = k_ref[0].reshape(tkv, H, D)
        v = v_ref[0].reshape(tkv, H, D)

        # All heads in one batched matmul: (H, tq, tkv), f32 accumulation.
        s = jnp.einsum('qhd,khd->hqk', q, k, preferred_element_type=jnp.float32)

        rows = qi * tq + lax.broadcasted_iota(jnp.int32, (1, tq, tkv), 1)
        cols = ki * tkv + lax.broadcasted_iota(jnp.int32, (1, tq, tkv), 2)
        s = jnp.where(cols <= rows, s, jnp.float32(-10000.0))

        m_prev = m_sc[...]                                 # (H, tq, 1)
        m_new = jnp.maximum(m_prev, jnp.max(s, axis=-1, keepdims=True))
        alpha = jnp.exp(m_prev - m_new)
        p = jnp.exp(s - m_new)                             # (H, tq, tkv) f32
        l_sc[...] = alpha * l_sc[...] + jnp.sum(p, axis=-1, keepdims=True)
        pv = jnp.einsum('hqk,khd->hqd', p.astype(v.dtype), v,
                        preferred_element_type=jnp.float32)
        acc_sc[...] = alpha * acc_sc[...] + pv
        m_sc[...] = m_new

    @pl.when(ki == n_kv - 1)
    def _finalize():
        x = x_ref[0].astype(jnp.float32)                   # (tq, C) residual
        inv_l = pl.reciprocal(l_sc[...], approx=True)      # EUP, (H, tq, 1)
        attn = acc_sc[...] * inv_l                         # (H, tq, D)
        attn = jnp.transpose(attn, (1, 0, 2)).reshape(tq, C)   # merge heads
        hidden = x + attn

        ln2 = _layernorm(hidden, ln2g_ref[...], ln2b_ref[...])
        h1 = jnp.dot(ln2.astype(w1_ref.dtype), w1_ref[...],
                     preferred_element_type=jnp.float32) + b1_ref[...]
        g = 0.5 * h1 * (1.0 + jnp.tanh(math.sqrt(2.0 / math.pi)
                                       * (h1 + 0.044715 * h1 * h1 * h1)))
        m = jnp.dot(g.astype(w2_ref.dtype), w2_ref[...],
                    preferred_element_type=jnp.float32) + b2_ref[...]
        out_ref[0] = (hidden + m).astype(out_ref.dtype)


# ----------------------------------------------------------------------------
# Wrapper
# ----------------------------------------------------------------------------
def block_forward(x, params, num_heads, *, q_tile=None, kv_tile=None,
                  compute_dtype=jnp.bfloat16):
    B, T, C = x.shape
    (ln1g, ln1b, wqkv, bqkv, ln2g, ln2b, w1, b1, w2, b2) = params
    assert C % num_heads == 0
    D = C // num_heads

    if q_tile is None:
        q_tile = min(T, 256)
    if kv_tile is None:
        kv_tile = min(T, 256)
    assert T % q_tile == 0 and T % kv_tile == 0

    # MXU operands in bf16 (f32 accumulation inside the kernels); LN params /
    # biases stay f32 for the VPU/elementwise path.
    wqkv_c = wqkv.astype(compute_dtype)
    w1_c = w1.astype(compute_dtype)
    w2_c = w2.astype(compute_dtype)

    full = lambda arr: pl.BlockSpec(arr.shape, lambda *_: (0,) * arr.ndim)

    # ---- pass 1: LN1 + QKV projection ----
    q, k, v = pl.pallas_call(
        functools.partial(_ln_qkv_kernel, head_dim=D),
        out_shape=(
            jax.ShapeDtypeStruct((B, T, C), compute_dtype),
            jax.ShapeDtypeStruct((B, T, C), compute_dtype),
            jax.ShapeDtypeStruct((B, T, C), compute_dtype),
        ),
        grid_spec=pltpu.PrefetchScalarGridSpec(
            num_scalar_prefetch=0,
            grid=(B, T // q_tile),
            in_specs=[
                pl.BlockSpec((1, q_tile, C), lambda b, i: (b, i, 0)),
                full(ln1g), full(ln1b), full(wqkv_c), full(bqkv),
            ],
            out_specs=(
                pl.BlockSpec((1, q_tile, C), lambda b, i: (b, i, 0)),
                pl.BlockSpec((1, q_tile, C), lambda b, i: (b, i, 0)),
                pl.BlockSpec((1, q_tile, C), lambda b, i: (b, i, 0)),
            ),
        ),
        compiler_params=pltpu.CompilerParams(
            dimension_semantics=("parallel", "parallel")),
    )(x, ln1g, ln1b, wqkv_c, bqkv)

    # ---- pass 2: causal flash attention + residual + LN2 + MLP ----
    out = pl.pallas_call(
        functools.partial(_attn_mlp_kernel, num_heads=num_heads),
        out_shape=jax.ShapeDtypeStruct((B, T, C), x.dtype),
        grid_spec=pltpu.PrefetchScalarGridSpec(
            num_scalar_prefetch=0,
            grid=(B, T // q_tile, T // kv_tile),
            in_specs=[
                pl.BlockSpec((1, q_tile, C), lambda b, qi, ki: (b, qi, 0)),   # x
                pl.BlockSpec((1, q_tile, C), lambda b, qi, ki: (b, qi, 0)),   # q
                pl.BlockSpec((1, kv_tile, C), lambda b, qi, ki: (b, ki, 0)),  # k
                pl.BlockSpec((1, kv_tile, C), lambda b, qi, ki: (b, ki, 0)),  # v
                full(ln2g), full(ln2b), full(w1_c), full(b1), full(w2_c), full(b2),
            ],
            out_specs=pl.BlockSpec((1, q_tile, C), lambda b, qi, ki: (b, qi, 0)),
            scratch_shapes=[
                pltpu.VMEM((num_heads, q_tile, 1), jnp.float32),   # running max
                pltpu.VMEM((num_heads, q_tile, 1), jnp.float32),   # running sum
                pltpu.VMEM((num_heads, q_tile, D), jnp.float32),   # output acc
            ],
        ),
        compiler_params=pltpu.CompilerParams(
            dimension_semantics=("parallel", "parallel", "arbitrary")),
    )(x, q, k, v, ln2g, ln2b, w1_c, b1, w2_c, b2)
    return out


# ----------------------------------------------------------------------------
# Pure-JAX reference matching the PyTorch module (eval mode, f32).
# ----------------------------------------------------------------------------
def block_reference(x, params, num_heads):
    (ln1g, ln1b, wqkv, bqkv, ln2g, ln2b, w1, b1, w2, b2) = params
    B, T, C = x.shape
    D = C // num_heads
    eps = 1e-5

    def ln(z, g, bta):
        mu = jnp.mean(z, -1, keepdims=True)
        var = jnp.mean((z - mu) ** 2, -1, keepdims=True)
        return (z - mu) / jnp.sqrt(var + eps) * g + bta

    ln1 = ln(x, ln1g[0], ln1b[0])
    qkv = ln1 @ wqkv + bqkv[0]
    q, k, v = jnp.split(qkv, 3, axis=-1)
    q = q.reshape(B, T, num_heads, D).transpose(0, 2, 1, 3)
    k = k.reshape(B, T, num_heads, D).transpose(0, 2, 1, 3)
    v = v.reshape(B, T, num_heads, D).transpose(0, 2, 1, 3)
    w = jnp.einsum('bhtd,bhsd->bhts', q, k) / math.sqrt(D)
    mask = jnp.tril(jnp.ones((T, T), bool))
    w = jnp.where(mask, w, -10000.0)
    w = jax.nn.softmax(w, axis=-1)
    a = jnp.einsum('bhts,bhsd->bhtd', w, v)
    a = a.transpose(0, 2, 1, 3).reshape(B, T, C)
    hidden = x + a
    ln2 = ln(hidden, ln2g[0], ln2b[0])
    h1 = ln2 @ w1 + b1[0]
    g = 0.5 * h1 * (1.0 + jnp.tanh(math.sqrt(2.0 / math.pi)
                                   * (h1 + 0.044715 * h1 ** 3)))
    m = g @ w2 + b2[0]
    return hidden + m


if __name__ == "__main__":
    # batch, seq, embed_dim, heads — small, but T=16 with 8-wide tiles exercises
    # multi-tile online softmax, causal-tile skipping and the resident output.
    B, T, C, H = 2, 16, 32, 4

    key = jax.random.PRNGKey(0)
    kx, kqkv, k1, k2 = jax.random.split(key, 4)

    x = jax.random.normal(kx, (B, T, C), jnp.float32)

    ln1g = jnp.ones((1, C), jnp.float32)
    ln1b = jnp.zeros((1, C), jnp.float32)
    ln2g = jnp.ones((1, C), jnp.float32)
    ln2b = jnp.zeros((1, C), jnp.float32)
    wqkv = 0.02 * jax.random.normal(kqkv, (C, 3 * C), jnp.float32)
    bqkv = jnp.zeros((1, 3 * C), jnp.float32)
    w1 = 0.02 * jax.random.normal(k1, (C, 4 * C), jnp.float32)
    b1 = jnp.zeros((1, 4 * C), jnp.float32)
    w2 = 0.02 * jax.random.normal(k2, (4 * C, C), jnp.float32)
    b2 = jnp.zeros((1, C), jnp.float32)

    params = (ln1g, ln1b, wqkv, bqkv, ln2g, ln2b, w1, b1, w2, b2)

    out = block_forward(x, params, H, q_tile=8, kv_tile=8)
    out = jax.block_until_ready(out)

    ref = block_reference(x, params, H)
    # bf16 MXU operands + approx reciprocal => slightly looser tolerance than f32.
    assert jnp.allclose(out, ref, atol=1e-2, rtol=1e-2), "mismatch vs reference"

    print("KERNEL_OK")
</pallas_src>

<mosaic_0001>
module attributes {stable_mosaic.version = 11 : i64} {
  func.func @_ln_qkv_kernel(%arg0: i32, %arg1: i32, %arg2: memref<1x8x32xf32, #tpu.memory_space<vmem>>, %arg3: memref<1x32xf32, #tpu.memory_space<vmem>>, %arg4: memref<1x32xf32, #tpu.memory_space<vmem>>, %arg5: memref<32x96xbf16, #tpu.memory_space<vmem>>, %arg6: memref<1x96xf32, #tpu.memory_space<vmem>>, %arg7: memref<1x8x32xbf16, #tpu.memory_space<vmem>>, %arg8: memref<1x8x32xbf16, #tpu.memory_space<vmem>>, %arg9: memref<1x8x32xbf16, #tpu.memory_space<vmem>>) attributes {dimension_semantics = [#tpu.dimension_semantics<parallel>, #tpu.dimension_semantics<parallel>], iteration_bounds = array<i64: 2, 2>, scalar_prefetch = 0 : i64, scratch_operands = 0 : i64, tpu.core_type = #tpu.core_type<tc>, window_params = [{transform_indices = @transform_0, window_bounds = array<i64: 1, 8, 32>}, {pipeline_mode = #tpu.pipeline_mode<synchronous>, transform_indices = @transform_1, window_bounds = array<i64: 1, 32>}, {pipeline_mode = #tpu.pipeline_mode<synchronous>, transform_indices = @transform_2, window_bounds = array<i64: 1, 32>}, {pipeline_mode = #tpu.pipeline_mode<synchronous>, transform_indices = @transform_3, window_bounds = array<i64: 32, 96>}, {pipeline_mode = #tpu.pipeline_mode<synchronous>, transform_indices = @transform_4, window_bounds = array<i64: 1, 96>}, {transform_indices = @transform_5, window_bounds = array<i64: 1, 8, 32>}, {transform_indices = @transform_6, window_bounds = array<i64: 1, 8, 32>}, {transform_indices = @transform_7, window_bounds = array<i64: 1, 8, 32>}]} {
    %c0 = arith.constant 0 : index
    %c0_0 = arith.constant 0 : index
    %c0_1 = arith.constant 0 : index
    %0 = vector.load %arg2[%c0, %c0_0, %c0_1] : memref<1x8x32xf32, #tpu.memory_space<vmem>>, vector<1x8x32xf32>
    %1 = vector.shape_cast %0 : vector<1x8x32xf32> to vector<8x32xf32>
    %c0_2 = arith.constant 0 : index
    %c0_3 = arith.constant 0 : index
    %2 = vector.load %arg3[%c0_2, %c0_3] : memref<1x32xf32, #tpu.memory_space<vmem>>, vector<1x32xf32>
    %c0_4 = arith.constant 0 : index
    %c0_5 = arith.constant 0 : index
    %3 = vector.load %arg4[%c0_4, %c0_5] : memref<1x32xf32, #tpu.memory_space<vmem>>, vector<1x32xf32>
    %cst = arith.constant dense<0.000000e+00> : vector<8xf32>
    %4 = vector.multi_reduction <add>, %1, %cst [1] : vector<8x32xf32> to vector<8xf32>
    %5 = vector.shape_cast %4 : vector<8xf32> to vector<8x1xf32>
    %cst_6 = arith.constant 3.200000e+01 : f32
    %6 = vector.broadcast %cst_6 : f32 to vector<8x1xf32>
    %7 = arith.divf %5, %6 : vector<8x1xf32>
    %8 = vector.broadcast %7 : vector<8x1xf32> to vector<8x32xf32>
    %9 = arith.subf %1, %8 : vector<8x32xf32>
    %10 = arith.mulf %9, %9 : vector<8x32xf32>
    %cst_7 = arith.constant dense<0.000000e+00> : vector<8xf32>
    %11 = vector.multi_reduction <add>, %10, %cst_7 [1] : vector<8x32xf32> to vector<8xf32>
    %12 = vector.shape_cast %11 : vector<8xf32> to vector<8x1xf32>
    %cst_8 = arith.constant 3.200000e+01 : f32
    %13 = vector.broadcast %cst_8 : f32 to vector<8x1xf32>
    %14 = arith.divf %12, %13 : vector<8x1xf32>
    %15 = vector.broadcast %7 : vector<8x1xf32> to vector<8x32xf32>
    %16 = arith.subf %1, %15 : vector<8x32xf32>
    %cst_9 = arith.constant 9.99999974E-6 : f32
    %17 = vector.broadcast %cst_9 : f32 to vector<8x1xf32>
    %18 = arith.addf %14, %17 : vector<8x1xf32>
    %19 = math.rsqrt %18 : vector<8x1xf32>
    %20 = vector.broadcast %19 : vector<8x1xf32> to vector<8x32xf32>
    %21 = arith.mulf %16, %20 : vector<8x32xf32>
    %22 = vector.broadcast %2 : vector<1x32xf32> to vector<8x32xf32>
    %23 = arith.mulf %21, %22 : vector<8x32xf32>
    %24 = vector.broadcast %3 : vector<1x32xf32> to vector<8x32xf32>
    %25 = arith.addf %23, %24 : vector<8x32xf32>
    %26 = arith.truncf %25 : vector<8x32xf32> to vector<8x32xbf16>
    %c0_10 = arith.constant 0 : index
    %c0_11 = arith.constant 0 : index
    %27 = vector.load %arg5[%c0_10, %c0_11] : memref<32x96xbf16, #tpu.memory_space<vmem>>, vector<32x96xbf16>
    %cst_12 = arith.constant dense<0.000000e+00> : vector<8x96xf32>
    %28 = tpu.matmul %26, %27, %cst_12 {dimension_numbers = #tpu.dot_dimension_numbers<[1], [0], [0], [1], [0, 0, 1, 1], [], []>} : vector<8x32xbf16>, vector<32x96xbf16>, vector<8x96xf32> -> vector<8x96xf32>
    %c0_13 = arith.constant 0 : index
    %c0_14 = arith.constant 0 : index
    %29 = vector.load %arg6[%c0_13, %c0_14] : memref<1x96xf32, #tpu.memory_space<vmem>>, vector<1x96xf32>
    %30 = vector.broadcast %29 : vector<1x96xf32> to vector<8x96xf32>
    %31 = arith.addf %28, %30 : vector<8x96xf32>
    %32 = vector.extract_strided_slice %31 {offsets = [0, 0], sizes = [8, 32], strides = [1, 1]} : vector<8x96xf32> to vector<8x32xf32>
    %cst_15 = arith.constant 0.353553385 : f32
    %33 = vector.broadcast %cst_15 : f32 to vector<8x32xf32>
    %34 = arith.mulf %32, %33 : vector<8x32xf32>
    %35 = arith.truncf %34 : vector<8x32xf32> to vector<8x32xbf16>
    %c0_16 = arith.constant 0 : index
    %c0_17 = arith.constant 0 : index
    %c0_18 = arith.constant 0 : index
    %36 = vector.load %arg7[%c0_16, %c0_17, %c0_18] : memref<1x8x32xbf16, #tpu.memory_space<vmem>>, vector<1x8x32xbf16>
    %37 = vector.shape_cast %36 : vector<1x8x32xbf16> to vector<8x32xbf16>
    %38 = vector.shape_cast %35 : vector<8x32xbf16> to vector<1x8x32xbf16>
    tpu.vector_store %arg7[%c0_16, %c0_17, %c0_18], %38 {strides = array<i32>} : memref<1x8x32xbf16, #tpu.memory_space<vmem>>, vector<1x8x32xbf16>,
    %39 = vector.extract_strided_slice %31 {offsets = [0, 32], sizes = [8, 32], strides = [1, 1]} : vector<8x96xf32> to vector<8x32xf32>
    %40 = arith.truncf %39 : vector<8x32xf32> to vector<8x32xbf16>
    %c0_19 = arith.constant 0 : index
    %c0_20 = arith.constant 0 : index
    %c0_21 = arith.constant 0 : index
    %41 = vector.load %arg8[%c0_19, %c0_20, %c0_21] : memref<1x8x32xbf16, #tpu.memory_space<vmem>>, vector<1x8x32xbf16>
    %42 = vector.shape_cast %41 : vector<1x8x32xbf16> to vector<8x32xbf16>
    %43 = vector.shape_cast %40 : vector<8x32xbf16> to vector<1x8x32xbf16>
    tpu.vector_store %arg8[%c0_19, %c0_20, %c0_21], %43 {strides = array<i32>} : memref<1x8x32xbf16, #tpu.memory_space<vmem>>, vector<1x8x32xbf16>,
    %44 = vector.extract_strided_slice %31 {offsets = [0, 64], sizes = [8, 32], strides = [1, 1]} : vector<8x96xf32> to vector<8x32xf32>
    %45 = arith.truncf %44 : vector<8x32xf32> to vector<8x32xbf16>
    %c0_22 = arith.constant 0 : index
    %c0_23 = arith.constant 0 : index
    %c0_24 = arith.constant 0 : index
    %46 = vector.load %arg9[%c0_22, %c0_23, %c0_24] : memref<1x8x32xbf16, #tpu.memory_space<vmem>>, vector<1x8x32xbf16>
    %47 = vector.shape_cast %46 : vector<1x8x32xbf16> to vector<8x32xbf16>
    %48 = vector.shape_cast %45 : vector<8x32xbf16> to vector<1x8x32xbf16>
    tpu.vector_store %arg9[%c0_22, %c0_23, %c0_24], %48 {strides = array<i32>} : memref<1x8x32xbf16, #tpu.memory_space<vmem>>, vector<1x8x32xbf16>,
    return
  }
  func.func @transform_0(%arg0: i32, %arg1: i32) -> (i32, i32, i32) {
    %c0_i32 = arith.constant 0 : i32
    %c0_i32_0 = arith.constant 0 : i32
    return %arg0, %arg1, %c0_i32 : i32, i32, i32
  }
  func.func @transform_1(%arg0: i32, %arg1: i32) -> (i32, i32) {
    %c0_i32 = arith.constant 0 : i32
    %c0_i32_0 = arith.constant 0 : i32
    %c0_i32_1 = arith.constant 0 : i32
    return %c0_i32, %c0_i32_0 : i32, i32
  }
  func.func @transform_2(%arg0: i32, %arg1: i32) -> (i32, i32) {
    %c0_i32 = arith.constant 0 : i32
    %c0_i32_0 = arith.constant 0 : i32
    %c0_i32_1 = arith.constant 0 : i32
    return %c0_i32, %c0_i32_0 : i32, i32
  }
  func.func @transform_3(%arg0: i32, %arg1: i32) -> (i32, i32) {
    %c0_i32 = arith.constant 0 : i32
    %c0_i32_0 = arith.constant 0 : i32
    %c0_i32_1 = arith.constant 0 : i32
    return %c0_i32, %c0_i32_0 : i32, i32
  }
  func.func @transform_4(%arg0: i32, %arg1: i32) -> (i32, i32) {
    %c0_i32 = arith.constant 0 : i32
    %c0_i32_0 = arith.constant 0 : i32
    %c0_i32_1 = arith.constant 0 : i32
    return %c0_i32, %c0_i32_0 : i32, i32
  }
  func.func @transform_5(%arg0: i32, %arg1: i32) -> (i32, i32, i32) {
    %c0_i32 = arith.constant 0 : i32
    %c0_i32_0 = arith.constant 0 : i32
    return %arg0, %arg1, %c0_i32 : i32, i32, i32
  }
  func.func @transform_6(%arg0: i32, %arg1: i32) -> (i32, i32, i32) {
    %c0_i32 = arith.constant 0 : i32
    %c0_i32_0 = arith.constant 0 : i32
    return %arg0, %arg1, %c0_i32 : i32, i32, i32
  }
  func.func @transform_7(%arg0: i32, %arg1: i32) -> (i32, i32, i32) {
    %c0_i32 = arith.constant 0 : i32
    %c0_i32_0 = arith.constant 0 : i32
    return %arg0, %arg1, %c0_i32 : i32, i32, i32
  }
}

</mosaic_0001>

<llo_original>
// kernel: tpu_custom_call.1
$region0: #{tpu_custom_call.1}
  #allocation0 [shape = 'u32[]', space=smem, size = 0x4, offset = 0x4, fixed_abs, tag = 'smem constant byte address 0x4 - core index']
  #allocation1 [shape = 'u32[144,128]{1,0:T(1,128)}', space=vmem, size = 0x12000, scoped, tag = 'internal scratch']
  %s0 = inlined_call_operand.hbm [shape: f32[2,16,32], index: 0, kind: input, shape index: {}]
  %s1 = inlined_call_operand.vmem [shape: f32[1,32], index: 1, kind: input, shape index: {}]
  %s2 = inlined_call_operand.vmem [shape: f32[1,32], index: 2, kind: input, shape index: {}]
  %s3 = inlined_call_operand.hbm [shape: bf16[32,96], index: 3, kind: input, shape index: {}]
  %s4 = inlined_call_operand.vmem [shape: f32[1,96], index: 4, kind: input, shape index: {}]
  %s5 = inlined_call_operand.hbm [shape: bf16[2,16,32], index: 5, kind: output, shape index: {0}]
  %s6 = inlined_call_operand.hbm [shape: bf16[2,16,32], index: 6, kind: output, shape index: {1}]
  %s7 = inlined_call_operand.hbm [shape: bf16[2,16,32], index: 7, kind: output, shape index: {2}]
  %8 = xla_tuple %s5, %s6, %s7
  %s9 = sld [smem:[#allocation0]]
  $region77: #{tpu_custom_call.1} parent=0
    _
  %s11 = ssub.s32 1, %s9
  %s12 = scalar_select 0, %s11, %s9
  $region1: #{tpu_custom_call.1} parent=0
    #allocation2 [shape = 'u8[8192]{0}', space=vmem, size = 0x2000, scoped, tag = 'input window, operand 0']
    #allocation3 [shape = 's32[2]{0}', space=sflag, size = 0x8, scoped, tag = 'scoped memory for tpu_custom_call.1']
    #allocation4 [shape = 's32[2]{0}', space=sflag, size = 0x8, scoped, tag = 'scoped memory for tpu_custom_call.1']
    #allocation5 [shape = 'u8[8192]{0}', space=vmem, size = 0x2000, scoped, tag = 'input window, operand 3, single buffered']
    #allocation6 [shape = 's32[1]{0}', space=sflag, size = 0x4, scoped, tag = 'scoped memory for tpu_custom_call.1']
    #allocation7 [shape = 'u8[4096]{0}', space=vmem, size = 0x1000, scoped, tag = 'output window, operand 0']
    #allocation8 [shape = 'u8[4096]{0}', space=vmem, size = 0x1000, scoped, tag = 'output window, operand 1']
    #allocation9 [shape = 's32[2]{0}', space=sflag, size = 0x8, scoped, tag = 'scoped memory for tpu_custom_call.1']
    #allocation10 [shape = 'u8[4096]{0}', space=vmem, size = 0x1000, scoped, tag = 'output window, operand 2']
    %13 = vsyncpa [#allocation3], 0
    %s14 = scalar_lea.sflag [#allocation3], 1
    %15 = vsyncpa %s14, 0
    %16 = vsyncpa [#allocation6], 0
    %17 = vsyncpa [#allocation4], 0
    %s18 = scalar_lea.sflag [#allocation4], 1
    %19 = vsyncpa %s18, 0
    %20 = vsyncpa [#allocation9], 0
    %s21 = scalar_lea.sflag [#allocation9], 1
    %22 = vsyncpa %s21, 0
    loop: start=0, step=1, limit=6
    $region2: #{tpu_custom_call.1} parent=1 // loop_pre_header
      _
    $region3: #{tpu_custom_call.1} parent=1 // loop_header
      %s24 = sphi 0, %s28
      %p25 = scmp.ge.s32.totalorder %s24, 6
      %s31 = sphi 0, %s43
      %s32 = sphi 0, %s39
      %s33 = sphi 0, %s31
      %s34 = sphi 0, %s32
      %s35 = sphi 0, %s33
      %s36 = sphi 0, %s34
      %s48 = sphi 0, %s50
      %s51 = sphi 0, %s48
      %s52 = sphi 0, %s51
      %s68 = sphi 0, %s52
      %s72 = sphi 0, %s72
      %s74 = sphi 0, %s72
      %s75 = sphi 0, %s74
      %s89 = sphi 0, %s75
      %s93 = sphi 0, %s93
      %s95 = sphi 0, %s93
      %s96 = sphi 0, %s95
      %s110 = sphi 0, %s96
      %s114 = sphi 0, %s114
      %s116 = sphi 0, %s114
      %s117 = sphi 0, %s116
      %s131 = sphi 0, %s117
      %s135 = sphi 0, %s135
      %s137 = sphi 0, %s135
      %s138 = sphi 0, %s137
      %s152 = sphi 0, %s138
      %s160 = sphi 0, %s162
      %s163 = sphi 0, %s160
      %s164 = sphi 0, %s163
      %s180 = sphi 0, %s164
      %s188 = sphi 0, %s190
      %s191 = sphi 0, %s188
      %s192 = sphi 0, %s191
      %s208 = sphi 0, %s192
      %s216 = sphi 0, %s218
      %s219 = sphi 0, %s216
      %s220 = sphi 0, %s219
      %s236 = sphi 0, %s220
    $region4: #{tpu_custom_call.1} parent=1 // loop_header_branch
      %27 = sbr.rel (%p25) target = $region8
    $region5: #{tpu_custom_call.1} parent=1 // loop_body
      %s29 = ssub.s32 %s24, 1
      %s30 = ssub.s32 %s24, 2
      %s37 = sadd.s32 1, %s32
      %p38 = scmp.ge.s32.totalorder %s37, 2
      %s39 = scalar_select %p38, 0, %s37
      %s40 = sadd.s32 1, %s31
      %s41 = scalar_select %p38, %s40, %s31
      %p42 = scmp.ge.s32.totalorder %s41, 2
      %s43 = scalar_select %p42, 0, %s41
      %s44 = ssub.s32 %s31, %s43
      %s45 = ssub.s32 %s32, %s39
      %s46 = sor.u32 %s44, %s45
      %p47 = scmp.eq.s32.totalorder %s46, 0
      %s49 = sadd.s32 %s48, 1
      %s50 = scalar_select %p47, %s48, %s49
      %p53 = pneg %p47
      %p54 = scmp.eq.s32.totalorder %s24, 3
      %p55 = por %p53, %p54
      %p56 = scmp.ne.s32.totalorder %s48, %s51
      %p57 = scmp.eq.s32.totalorder %s24, 0
      %p58 = por %p56, %p57
      %p59 = scmp.ne.s32.totalorder %s48, %s51
      %p60 = scmp.eq.s32.totalorder %s29, 3
      %p61 = por %p59, %p60
      %p62 = scmp.ne.s32.totalorder %s51, %s52
      %p63 = scmp.eq.s32.totalorder %s29, 0
      %p64 = por %p62, %p63
      %p65 = scmp.ne.s32.totalorder %s51, %s52
      %p66 = scmp.eq.s32.totalorder %s30, 3
      %p67 = por %p65, %p66
      %p69 = scmp.ne.s32.totalorder %s52, %s68
      %p70 = scmp.eq.s32.totalorder %s30, 0
      %p71 = por %p69, %p70
      %s73 = sadd.s32 %s72, 1
      %p76 = scmp.eq.s32.totalorder %s24, 3
      %p77 = scmp.ne.s32.totalorder %s72, %s74
      %p78 = scmp.eq.s32.totalorder %s24, 0
      %p79 = por %p77, %p78
      %p80 = scmp.ne.s32.totalorder %s72, %s74
      %p81 = scmp.eq.s32.totalorder %s29, 3
      %p82 = por %p80, %p81
      %p83 = scmp.ne.s32.totalorder %s74, %s75
      %p84 = scmp.eq.s32.totalorder %s29, 0
      %p85 = por %p83, %p84
      %p86 = scmp.ne.s32.totalorder %s74, %s75
      %p87 = scmp.eq.s32.totalorder %s30, 3
      %p88 = por %p86, %p87
      %p90 = scmp.ne.s32.totalorder %s75, %s89
      %p91 = scmp.eq.s32.totalorder %s30, 0
      %p92 = por %p90, %p91
      %s94 = sadd.s32 %s93, 1
      %p97 = scmp.eq.s32.totalorder %s24, 3
      %p98 = scmp.ne.s32.totalorder %s93, %s95
      %p99 = scmp.eq.s32.totalorder %s24, 0
      %p100 = por %p98, %p99
      %p101 = scmp.ne.s32.totalorder %s93, %s95
      %p102 = scmp.eq.s32.totalorder %s29, 3
      %p103 = por %p101, %p102
      %p104 = scmp.ne.s32.totalorder %s95, %s96
      %p105 = scmp.eq.s32.totalorder %s29, 0
      %p106 = por %p104, %p105
      %p107 = scmp.ne.s32.totalorder %s95, %s96
      %p108 = scmp.eq.s32.totalorder %s30, 3
      %p109 = por %p107, %p108
      %p111 = scmp.ne.s32.totalorder %s96, %s110
      %p112 = scmp.eq.s32.totalorder %s30, 0
      %p113 = por %p111, %p112
      %s115 = sadd.s32 %s114, 1
      %p118 = scmp.eq.s32.totalorder %s24, 3
      %p119 = scmp.ne.s32.totalorder %s114, %s116
      %p120 = scmp.eq.s32.totalorder %s24, 0
      %p121 = por %p119, %p120
      %p122 = scmp.ne.s32.totalorder %s114, %s116
      %p123 = scmp.eq.s32.totalorder %s29, 3
      %p124 = por %p122, %p123
      %p125 = scmp.ne.s32.totalorder %s116, %s117
      %p126 = scmp.eq.s32.totalorder %s29, 0
      %p127 = por %p125, %p126
      %p128 = scmp.ne.s32.totalorder %s116, %s117
      %p129 = scmp.eq.s32.totalorder %s30, 3
      %p130 = por %p128, %p129
      %p132 = scmp.ne.s32.totalorder %s117, %s131
      %p133 = scmp.eq.s32.totalorder %s30, 0
      %p134 = por %p132, %p133
      %s136 = sadd.s32 %s135, 1
      %p139 = scmp.eq.s32.totalorder %s24, 3
      %p140 = scmp.ne.s32.totalorder %s135, %s137
      %p141 = scmp.eq.s32.totalorder %s24, 0
      %p142 = por %p140, %p141
      %p143 = scmp.ne.s32.totalorder %s135, %s137
      %p144 = scmp.eq.s32.totalorder %s29, 3
      %p145 = por %p143, %p144
      %p146 = scmp.ne.s32.totalorder %s137, %s138
      %p147 = scmp.eq.s32.totalorder %s29, 0
      %p148 = por %p146, %p147
      %p149 = scmp.ne.s32.totalorder %s137, %s138
      %p150 = scmp.eq.s32.totalorder %s30, 3
      %p151 = por %p149, %p150
      %p153 = scmp.ne.s32.totalorder %s138, %s152
      %p154 = scmp.eq.s32.totalorder %s30, 0
      %p155 = por %p153, %p154
      %s156 = ssub.s32 %s31, %s43
      %s157 = ssub.s32 %s32, %s39
      %s158 = sor.u32 %s156, %s157
      %p159 = scmp.eq.s32.totalorder %s158, 0
      %s161 = sadd.s32 %s160, 1
      %s162 = scalar_select %p159, %s160, %s161
      %p165 = pneg %p159
      %p166 = scmp.eq.s32.totalorder %s24, 3
      %p167 = por %p165, %p166
      %p168 = scmp.ne.s32.totalorder %s160, %s163
      %p169 = scmp.eq.s32.totalorder %s24, 0
      %p170 = por %p168, %p169
      %p171 = scmp.ne.s32.totalorder %s160, %s163
      %p172 = scmp.eq.s32.totalorder %s29, 3
      %p173 = por %p171, %p172
      %p174 = scmp.ne.s32.totalorder %s163, %s164
      %p175 = scmp.eq.s32.totalorder %s29, 0
      %p176 = por %p174, %p175
      %p177 = scmp.ne.s32.totalorder %s163, %s164
      %p178 = scmp.eq.s32.totalorder %s30, 3
      %p179 = por %p177, %p178
      %p181 = scmp.ne.s32.totalorder %s164, %s180
      %p182 = scmp.eq.s32.totalorder %s30, 0
      %p183 = por %p181, %p182
      %s184 = ssub.s32 %s31, %s43
      %s185 = ssub.s32 %s32, %s39
      %s186 = sor.u32 %s184, %s185
      %p187 = scmp.eq.s32.totalorder %s186, 0
      %s189 = sadd.s32 %s188, 1
      %s190 = scalar_select %p187, %s188, %s189
      %p193 = pneg %p187
      %p194 = scmp.eq.s32.totalorder %s24, 3
      %p195 = por %p193, %p194
      %p196 = scmp.ne.s32.totalorder %s188, %s191
      %p197 = scmp.eq.s32.totalorder %s24, 0
      %p198 = por %p196, %p197
      %p199 = scmp.ne.s32.totalorder %s188, %s191
      %p200 = scmp.eq.s32.totalorder %s29, 3
      %p201 = por %p199, %p200
      %p202 = scmp.ne.s32.totalorder %s191, %s192
      %p203 = scmp.eq.s32.totalorder %s29, 0
      %p204 = por %p202, %p203
      %p205 = scmp.ne.s32.totalorder %s191, %s192
      %p206 = scmp.eq.s32.totalorder %s30, 3
      %p207 = por %p205, %p206
      %p209 = scmp.ne.s32.totalorder %s192, %s208
      %p210 = scmp.eq.s32.totalorder %s30, 0
      %p211 = por %p209, %p210
      %s212 = ssub.s32 %s31, %s43
      %s213 = ssub.s32 %s32, %s39
      %s214 = sor.u32 %s212, %s213
      %p215 = scmp.eq.s32.totalorder %s214, 0
      %s217 = sadd.s32 %s216, 1
      %s218 = scalar_select %p215, %s216, %s217
      %p221 = pneg %p215
      %p222 = scmp.eq.s32.totalorder %s24, 3
      %p223 = por %p221, %p222
      %p224 = scmp.ne.s32.totalorder %s216, %s219
      %p225 = scmp.eq.s32.totalorder %s24, 0
      %p226 = por %p224, %p225
      %p227 = scmp.ne.s32.totalorder %s216, %s219
      %p228 = scmp.eq.s32.totalorder %s29, 3
      %p229 = por %p227, %p228
      %p230 = scmp.ne.s32.totalorder %s219, %s220
      %p231 = scmp.eq.s32.totalorder %s29, 0
      %p232 = por %p230, %p231
      %p233 = scmp.ne.s32.totalorder %s219, %s220
      %p234 = scmp.eq.s32.totalorder %s30, 3
      %p235 = por %p233, %p234
      %p237 = scmp.ne.s32.totalorder %s220, %s236
      %p238 = scmp.eq.s32.totalorder %s30, 0
      %p239 = por %p237, %p238
      %p240 = scmp.le.s32.totalorder 1, %s24
      %p241 = scmp.lt.s32.totalorder %s24, 5
      %p242 = pnand %p240, %p241
      %p243 = pneg %p242
      // Predicated region
      $region9: #{tpu_custom_call.1} parent=5 // pred_check
        _
      $region10: #{tpu_custom_call.1} parent=5 // pred_check_branch
        %245 = sbr.rel (%p242) target = $region12
      $region11: #{tpu_custom_call.1} parent=5 // pred_region
        %s246 = ssub.s32 %s24, 1
        // Predicated region
        $region13: #{tpu_custom_call.1} parent=11 // pred_check
          %p247 = pneg %p85
        $region14: #{tpu_custom_call.1} parent=11 // pred_check_branch
          %249 = sbr.rel (%p247) target = $region16
        $region15: #{tpu_custom_call.1} parent=11 // pred_region
          _
        $region16: #{tpu_custom_call.1} parent=11 // pred_fallthru
          _
        // Predicated region
        $region17: #{tpu_custom_call.1} parent=11 // pred_check
          %p250 = pneg %p106
        $region18: #{tpu_custom_call.1} parent=11 // pred_check_branch
          %252 = sbr.rel (%p250) target = $region20
        $region19: #{tpu_custom_call.1} parent=11 // pred_region
          _
        $region20: #{tpu_custom_call.1} parent=11 // pred_fallthru
          _
        // Predicated region
        $region21: #{tpu_custom_call.1} parent=11 // pred_check
          %p253 = pneg %p127
        $region22: #{tpu_custom_call.1} parent=11 // pred_check_branch
          %255 = sbr.rel (%p253) target = $region24
        $region23: #{tpu_custom_call.1} parent=11 // pred_region
          %s257 = ssub.s32 256, 256
          %258 = vsyncadd [#allocation6], %s257
          %s259 = sshll.u32 [#allocation5], 4
          %s260 = int_to_ptr.vmem [resolvable:$true] %s259
          %265 = dma.hbm_to_vmem [thread:$0]  %s3, 256, %s260, [#allocation6], 64, 64, 4
        $region24: #{tpu_custom_call.1} parent=11 // pred_fallthru
          _
        // Predicated region
        $region25: #{tpu_custom_call.1} parent=11 // pred_check
          %p266 = pneg %p148
        $region26: #{tpu_custom_call.1} parent=11 // pred_check_branch
          %268 = sbr.rel (%p266) target = $region28
        $region27: #{tpu_custom_call.1} parent=11 // pred_region
          _
        $region28: #{tpu_custom_call.1} parent=11 // pred_fallthru
          _
      $region12: #{tpu_custom_call.1} parent=5 // pred_fallthru
        _
      %p269 = scmp.lt.s32.totalorder %s24, 4
      // Predicated region
      $region29: #{tpu_custom_call.1} parent=5 // pred_check
        %p270 = pneg %p269
      $region30: #{tpu_custom_call.1} parent=5 // pred_check_branch
        %272 = sbr.rel (%p270) target = $region32
      $region31: #{tpu_custom_call.1} parent=5 // pred_region
        // Predicated region
        $region33: #{tpu_custom_call.1} parent=31 // pred_check
          %p273 = pneg %p58
        $region34: #{tpu_custom_call.1} parent=31 // pred_check_branch
          %275 = sbr.rel (%p273) target = $region36
        $region35: #{tpu_custom_call.1} parent=31 // pred_region
          %s276 = sand.u32 %s48, 1
          %s277 = scalar_lea.sflag [#allocation3], %s276
          %s278 = sand.u32 %s48, 1
          %s279 = smul.addr %s278, 8
          %s280 = scalar_lea.vmem [#allocation2], %s279
          %s282 = ssub.s32 128, 128
          %283 = vsyncadd %s277, %s282
          %s284 = smul.addr %s31, 2
          %s285 = sadd.s32 %s32, %s284
          %s286 = smul.addr %s285, 128
          %s287 = scalar_lea.hbm %s0, %s286
          %s289 = sshll.u32 %s280, 4
          %s290 = int_to_ptr.vmem [resolvable:$true] %s289
          %292 = dma.hbm_to_vmem [thread:$0]  %s287, 128, %s290, %s277
        $region36: #{tpu_custom_call.1} parent=31 // pred_fallthru
          _
      $region32: #{tpu_custom_call.1} parent=5 // pred_fallthru
        _
      %p293 = scmp.le.s32.totalorder 1, %s24
      %p294 = scmp.lt.s32.totalorder %s24, 5
      %p295 = pnand %p293, %p294
      %p296 = pneg %p295
      // Predicated region
      $region37: #{tpu_custom_call.1} parent=5 // pred_check
        _
      $region38: #{tpu_custom_call.1} parent=5 // pred_check_branch
        %298 = sbr.rel (%p295) target = $region40
      $region39: #{tpu_custom_call.1} parent=5 // pred_region
        %s299 = ssub.s32 %s24, 1
        %s300 = sand.u32 %s51, 1
        %s301 = scalar_lea.sflag [#allocation3], %s300
        %s302 = sand.u32 %s51, 1
        %s303 = smul.addr %s302, 8
        %s304 = scalar_lea.vmem [#allocation2], %s303
        // Predicated region
        $region41: #{tpu_custom_call.1} parent=39 // pred_check
          %p305 = pneg %p64
        $region42: #{tpu_custom_call.1} parent=39 // pred_check_branch
          %307 = sbr.rel (%p305) target = $region44
        $region43: #{tpu_custom_call.1} parent=39 // pred_region
          %308 = dma.done %s301, 128
        $region44: #{tpu_custom_call.1} parent=39 // pred_fallthru
          _
        // Predicated region
        $region45: #{tpu_custom_call.1} parent=39 // pred_check
          %p309 = pneg %p127
        $region46: #{tpu_custom_call.1} parent=39 // pred_check_branch
          %311 = sbr.rel (%p309) target = $region48
        $region47: #{tpu_custom_call.1} parent=39 // pred_region
          %312 = dma.done [#allocation6], 256
        $region48: #{tpu_custom_call.1} parent=39 // pred_fallthru
          _
        %s313 = sand.u32 %s51, 1
        %s314 = scalar_lea.sflag [#allocation3], %s313
        %s315 = sand.u32 %s51, 1
        %s316 = smul.addr %s315, 8
        %s317 = scalar_lea.vmem [#allocation2], %s316
        %p318 = pneg %p64
        %p319 = pneg %p61
        %p320 = pneg %p85
        %p321 = pneg %p82
        %p322 = pneg %p106
        %p323 = pneg %p103
        %p324 = pneg %p127
        %p325 = pneg %p124
        %p326 = pneg %p148
        %p327 = pneg %p145
        %p328 = pneg %p176
        %p329 = pneg %p173
        %s330 = sand.u32 %s163, 1
        %s331 = scalar_lea.sflag [#allocation4], %s330
        %s332 = sand.u32 %s163, 1
        %s333 = smul.addr %s332, 4
        %s334 = scalar_lea.vmem [#allocation7], %s333
        %p335 = pneg %p204
        %p336 = pneg %p201
        %s337 = sand.u32 %s29, 1
        %s338 = scalar_lea.sflag [#allocation9], %s337
        %s339 = sand.u32 %s191, 1
        %s340 = smul.addr %s339, 4
        %s341 = scalar_lea.vmem [#allocation8], %s340
        %p342 = pneg %p232
        %p343 = pneg %p229
        %s344 = sand.u32 %s29, 1
        %s345 = scalar_lea.sflag [#allocation9], %s344
        %s346 = sand.u32 %s219, 1
        %s347 = smul.addr %s346, 4
        %s348 = scalar_lea.vmem [#allocation10], %s347
        %v350 = vld [vmem:[%s304] sm:$0xff]
        %v351 = vld [vmem:[%s1] sm:$0x1]
        %v352 = vld [vmem:[%s2] sm:$0x1]
        %vm353 = vcmask 261120
        %v354 = vsel %vm353, %v350, 0.0
        %355 = vadd.xlane.f32.xlu0 %v354
        %v356 = vpop.xlane.xlu0 %355
        %v357 = vrcp.pop 32.0
        %v358 = vmul.f32 %v356, %v357
        %v359 = vsub.f32 %v350, %v358
        %v360 = vmul.f32 %v359, %v359
        %v361 = vsel %vm353, %v360, 0.0
        %362 = vadd.xlane.f32.xlu0 %v361
        %v363 = vpop.xlane.xlu0 %362
        %v364 = vmul.f32 %v363, %v357
        %v365 = vadd.f32 %v364, 1e-05
        %v366 = vrsqrt.pop %v365
        %v367 = vmul.f32 %v359, %v366
        %v369 = vlaneseq
        %v370 = vshrl.u32 %v369, 7
        %v371 = vsub.s32 0, %v370
        %v372 = vrot.slane %v351, %v371
        %v374 = vmul.f32 %v367, %v372
        %v376 = vlaneseq
        %v377 = vshrl.u32 %v376, 7
        %v378 = vsub.s32 0, %v377
        %v379 = vrot.slane %v352, %v378
        %v381 = vadd.f32 %v374, %v379
        %v382 = vpack.c.bf16 %v381, %v381
        %v383 = vld [vmem:[#allocation5] sm:$0xf]
        %v384 = vld [vmem:[#allocation5 + $0x4] sm:$0xf]
        %v385 = vld [vmem:[#allocation5 + $0x8] sm:$0xf]
        %v386 = vld [vmem:[#allocation5 + $0xc] sm:$0xf]
        %v387 = vld [vmem:[%s4] sm:$0x1]
        %v389 = vlaneseq
        %v390 = vshrl.u32 %v389, 7
        %v391 = vsub.s32 0, %v390
        %v392 = vrot.slane %v387, %v391
        %v398 = vunpack.c.l.b16 %v383
        %v399 = vunpack.c.l.b16 %v384
        %v400 = vunpack.c.l.b16 %v385
        %v401 = vunpack.c.l.b16 %v386
        %v402 = vpack.c.b16 %v399, %v398
        %v403 = vpack.c.b16 %v401, %v400
        %v407 = vsel %vm353, %v382, 0
        %409 = vmatprep.subr.bf16.mxu0 0
        %410 = vmatpush1.bf16.msra.mxu0 %v402
        %411 = vmatprep.subr.bf16.mxu0 0
        %412 = vmatpush1.bf16.msra.mxu0 %v403
        %413 = vmatprep.subr.bf16.mxu0 0
        %414 = vmatpush1.bf16.msra.mxu0 0
        %415 = vmatprep.subr.bf16.mxu0 0
        %416 = vmatpush1.bf16.msra.mxu0 0
        %417 = vmatprep.subr.bf16.mxu0 0
        %418 = vmatpush1.bf16.msra.mxu0 0
        %419 = vmatprep.subr.bf16.mxu0 0
        %420 = vmatpush1.bf16.msra.mxu0 0
        %421 = vmatprep.subr.bf16.mxu0 0
        %422 = vmatpush1.bf16.msra.mxu0 0
        %423 = vmatprep.subr.bf16.mxu0 0
        %424 = vmatpush1.bf16.msra.mxu0 0
        %425 = vmatprep.subr.bf16.mxu0 0
        %426 = vmatpush1.bf16.msra.mxu0 0
        %427 = vmatprep.subr.bf16.mxu0 0
        %428 = vmatpush1.bf16.msra.mxu0 0
        %429 = vmatprep.subr.bf16.mxu0 0
        %430 = vmatpush1.bf16.msra.mxu0 0
        %431 = vmatprep.subr.bf16.mxu0 0
        %432 = vmatpush1.bf16.msra.mxu0 0
        %433 = vmatprep.subr.bf16.mxu0 0
        %434 = vmatpush1.bf16.msra.mxu0 0
        %435 = vmatprep.subr.bf16.mxu0 0
        %436 = vmatpush1.bf16.msra.mxu0 0
        %437 = vmatprep.subr.bf16.mxu0 0
        %438 = vmatpush1.bf16.msra.mxu0 0
        %439 = vmatprep.subr.bf16.mxu0 0
        %440 = vmatpush1.bf16.msra.mxu0 0
        %441 = vmatprep.mubr.bf16.mxu0 0
        %442 = vmatmul.mubr.bf16.gmra.mrb[0].mxu0 %v407
        %v443 = vpop.f32.mrb[0].mxu0
        %v444 = vadd.f32 %v392, %v443
        %v445 = vpop.f32.mrb[0].mxu0
        %v446 = vpop.f32.mrb[0].mxu0
        %v447 = vpop.f32.mrb[0].mxu0
        %448 = vdwg.mxu0
        %v449 = vmul.f32 %v444, 0.35355338
        %v450 = vpack.c.bf16 %v449, %v449
        %vm451 = vcmask 257024
        %452 = vst.msk [vmem:[%s334] sm:$0xf] %vm451, %v450
        %v453 = vpack.c.bf16 %v444, %v444
        %v455 = vunpack.c.l.b16 %v453
        %v456 = vpack.c.b16 %v455, %v455
        %457 = vrot.lane.b32.xlu0 %v456, 96
        %v458 = vpop.permute.xlu0 %457
        %460 = vst.msk [vmem:[%s341] sm:$0xf] %vm451, %v458
        %461 = vrot.lane.b32.xlu0 %v456, 64
        %v462 = vpop.permute.xlu0 %461
        %464 = vst.msk [vmem:[%s348] sm:$0xf] %vm451, %v462
        %s465 = sand.u32 %s163, 1
        %s466 = scalar_lea.sflag [#allocation4], %s465
        %s467 = sand.u32 %s163, 1
        %s468 = smul.addr %s467, 4
        %s469 = scalar_lea.vmem [#allocation7], %s468
        %s470 = sand.u32 %s29, 1
        %s471 = scalar_lea.sflag [#allocation9], %s470
        %s472 = sand.u32 %s191, 1
        %s473 = smul.addr %s472, 4
        %s474 = scalar_lea.vmem [#allocation8], %s473
        %s475 = sand.u32 %s29, 1
        %s476 = scalar_lea.sflag [#allocation9], %s475
        %s477 = sand.u32 %s219, 1
        %s478 = smul.addr %s477, 4
        %s479 = scalar_lea.vmem [#allocation10], %s478
        // Predicated region
        $region49: #{tpu_custom_call.1} parent=39 // pred_check
          %p480 = pneg %p173
        $region50: #{tpu_custom_call.1} parent=39 // pred_check_branch
          %482 = sbr.rel (%p480) target = $region52
        $region51: #{tpu_custom_call.1} parent=39 // pred_region
          %s484 = ssub.s32 64, 64
          %485 = vsyncadd %s466, %s484
          %s486 = smul.addr %s33, 2
          %s487 = sadd.s32 %s34, %s486
          %s488 = smul.addr %s487, 64
          %s489 = scalar_lea.hbm %s5, %s488
          %s491 = sshll.u32 %s469, 4
          %s492 = int_to_ptr.vmem [resolvable:$true] %s491
          %494 = dma.vmem_to_hbm [thread:$0]  %s492, 64, %s489, %s466
        $region52: #{tpu_custom_call.1} parent=39 // pred_fallthru
          _
        // Predicated region
        $region53: #{tpu_custom_call.1} parent=39 // pred_check
          %p495 = pneg %p201
        $region54: #{tpu_custom_call.1} parent=39 // pred_check_branch
          %497 = sbr.rel (%p495) target = $region56
        $region55: #{tpu_custom_call.1} parent=39 // pred_region
          %s499 = ssub.s32 64, 64
          %500 = vsyncadd %s471, %s499
          %s501 = smul.addr %s33, 2
          %s502 = sadd.s32 %s34, %s501
          %s503 = smul.addr %s502, 64
          %s504 = scalar_lea.hbm %s6, %s503
          %s506 = sshll.u32 %s474, 4
          %s507 = int_to_ptr.vmem [resolvable:$true] %s506
          %509 = dma.vmem_to_hbm [thread:$0]  %s507, 64, %s504, %s471
        $region56: #{tpu_custom_call.1} parent=39 // pred_fallthru
          _
        // Predicated region
        $region57: #{tpu_custom_call.1} parent=39 // pred_check
          %p510 = pneg %p229
        $region58: #{tpu_custom_call.1} parent=39 // pred_check_branch
          %512 = sbr.rel (%p510) target = $region60
        $region59: #{tpu_custom_call.1} parent=39 // pred_region
          %s514 = ssub.s32 64, 64
          %515 = vsyncadd %s476, %s514
          %s516 = smul.addr %s33, 2
          %s517 = sadd.s32 %s34, %s516
          %s518 = smul.addr %s517, 64
          %s519 = scalar_lea.hbm %s7, %s518
          %s521 = sshll.u32 %s479, 4
          %s522 = int_to_ptr.vmem [resolvable:$true] %s521
          %524 = dma.vmem_to_hbm [thread:$0]  %s522, 64, %s519, %s476
        $region60: #{tpu_custom_call.1} parent=39 // pred_fallthru
          _
      $region40: #{tpu_custom_call.1} parent=5 // pred_fallthru
        _
      %p525 = scmp.le.s32.totalorder 2, %s24
      // Predicated region
      $region61: #{tpu_custom_call.1} parent=5 // pred_check
        %p526 = pneg %p525
      $region62: #{tpu_custom_call.1} parent=5 // pred_check_branch
        %528 = sbr.rel (%p526) target = $region64
      $region63: #{tpu_custom_call.1} parent=5 // pred_region
        %s529 = ssub.s32 %s24, 2
        // Predicated region
        $region65: #{tpu_custom_call.1} parent=63 // pred_check
          %p530 = pneg %p179
        $region66: #{tpu_custom_call.1} parent=63 // pred_check_branch
          %532 = sbr.rel (%p530) target = $region68
        $region67: #{tpu_custom_call.1} parent=63 // pred_region
          %s533 = sand.u32 %s164, 1
          %s534 = scalar_lea.sflag [#allocation4], %s533
          %s535 = sand.u32 %s164, 1
          %s536 = smul.addr %s535, 4
          %s537 = scalar_lea.vmem [#allocation7], %s536
          %538 = dma.done %s534, 64
        $region68: #{tpu_custom_call.1} parent=63 // pred_fallthru
          _
        // Predicated region
        $region69: #{tpu_custom_call.1} parent=63 // pred_check
          %p539 = pneg %p207
        $region70: #{tpu_custom_call.1} parent=63 // pred_check_branch
          %541 = sbr.rel (%p539) target = $region72
        $region71: #{tpu_custom_call.1} parent=63 // pred_region
          %s542 = sand.u32 %s30, 1
          %s543 = scalar_lea.sflag [#allocation9], %s542
          %s544 = sand.u32 %s192, 1
          %s545 = smul.addr %s544, 4
          %s546 = scalar_lea.vmem [#allocation8], %s545
          %547 = dma.done %s543, 64
        $region72: #{tpu_custom_call.1} parent=63 // pred_fallthru
          _
        // Predicated region
        $region73: #{tpu_custom_call.1} parent=63 // pred_check
          %p548 = pneg %p235
        $region74: #{tpu_custom_call.1} parent=63 // pred_check_branch
          %550 = sbr.rel (%p548) target = $region76
        $region75: #{tpu_custom_call.1} parent=63 // pred_region
          %s551 = sand.u32 %s30, 1
          %s552 = scalar_lea.sflag [#allocation9], %s551
          %s553 = sand.u32 %s220, 1
          %s554 = smul.addr %s553, 4
          %s555 = scalar_lea.vmem [#allocation10], %s554
          %556 = dma.done %s552, 64
        $region76: #{tpu_custom_call.1} parent=63 // pred_fallthru
          _
      $region64: #{tpu_custom_call.1} parent=5 // pred_fallthru
        _
    $region6: #{tpu_custom_call.1} parent=1 // loop_footer
      %s28 = sadd.s32 1, %s24
    $region7: #{tpu_custom_call.1} parent=1 // loop_footer_branch
      %23 = sbr.rel target = $region3
    $region8: #{tpu_custom_call.1} parent=1 // loop_exit
      _
    %557 = vsyncpa [#allocation3], 1
    %s558 = scalar_lea.sflag [#allocation3], 1
    %559 = vsyncpa %s558, 1
    %560 = vsyncpa [#allocation6], 1
    %561 = vsyncpa [#allocation4], 1
    %s562 = scalar_lea.sflag [#allocation4], 1
    %563 = vsyncpa %s562, 1
    %564 = vsyncpa [#allocation9], 1
    %s565 = scalar_lea.sflag [#allocation9], 1
    %566 = vsyncpa %s565, 1

</llo_original>
